<compile_context>
chip_gen: v7x
topology: tpu7x:2x2x1
jax: 0.10.0
libtpu: 0.0.40
codegen_flags: <defaults>
</compile_context>

<pallas_src>
import functools

import jax
import jax.numpy as jnp
from jax.experimental import pallas as pl
from jax.experimental.pallas import tpu as pltpu


# -----------------------------------------------------------------------------
# Capability probe: BlockSpec(pipeline_mode=pl.Buffered(n)) through TPU lowering.
# -----------------------------------------------------------------------------
def _probe_pipeline_mode():
    try:
        def _copy(a_ref, b_ref, o_ref):
            o_ref[...] = a_ref[...] + b_ref[...]

        f = pl.pallas_call(
            _copy,
            out_shape=jax.ShapeDtypeStruct((32, 128), jnp.float32),
            grid=(4,),
            in_specs=[
                pl.BlockSpec((8, 128), lambda i: (0, 0),
                             pipeline_mode=pl.Buffered(1)),   # invariant, single buffer
                pl.BlockSpec((8, 128), lambda i: (i, 0),
                             pipeline_mode=pl.Buffered(3)),   # streamed, 3-deep
            ],
            out_specs=pl.BlockSpec((8, 128), lambda i: (i, 0)),
        )
        a = jnp.zeros((8, 128), jnp.float32)
        b = jnp.zeros((32, 128), jnp.float32)
        jax.block_until_ready(f(a, b))
        return True
    except Exception:
        return False


_HAS_PIPELINE_MODE = _probe_pipeline_mode()


def _spec(shape, index_map, buffers=None):
    """BlockSpec with optional explicit pipeline depth (no-op on older jax)."""
    if buffers is not None and _HAS_PIPELINE_MODE:
        return pl.BlockSpec(shape, index_map, pipeline_mode=pl.Buffered(buffers))
    return pl.BlockSpec(shape, index_map)


def _round_up(n, m):
    return ((n + m - 1) // m) * m


def _vmem_limit_bytes():
    """min(96 MiB, 3/4 of physical VMEM): 96 MiB on 128-MiB v5e/v6e, 48 MiB on
    64-MiB v7x.  Conservative 64-MiB fallback if the hardware query fails."""
    cap = 64 * 1024 * 1024
    try:
        cap = int(pltpu.get_tpu_info().vmem_capacity_bytes)
    except Exception:
        pass
    return min(96 * 1024 * 1024, (cap * 3) // 4)


def _vmem_estimate(tb, tk, Hp, H2p, x_bytes, w_bytes, num_k):
    """Rough per-step VMEM footprint: pipeline buffers + scratch + intermediates."""
    x_buffers = 3 if _HAS_PIPELINE_MODE else 2
    w1_buffers = 1 if (num_k == 1 and _HAS_PIPELINE_MODE) else 2
    small_buffers = 1 if _HAS_PIPELINE_MODE else 2
    xbuf = x_buffers * tb * tk * x_bytes
    w1buf = w1_buffers * tk * Hp * w_bytes
    small = small_buffers * (Hp * H2p * w_bytes + (Hp + 2 * H2p) * 4)
    acc = tb * Hp * 4                                   # f32 scratch accumulator
    interm = tb * (Hp + H2p) * (4 + w_bytes)            # h1/h2 working set (loose)
    outbuf = 2 * tb * 4
    return xbuf + w1buf + small + acc + interm + outbuf


# -----------------------------------------------------------------------------
# Kernel: one (batch tile, K tile) grid step of the fused MLP.
# -----------------------------------------------------------------------------
def _mlp_kernel(x_ref, w1_ref, b1_ref, w2_ref, b2_ref, w3_ref, b3_ref,
                o_ref, acc_ref):
    k = pl.program_id(1)

    # layer_1 partial product over this K slice.  x is cast in-kernel (VPU) so
    # the wrapper never rewrites x in HBM; accumulation is f32 in VMEM scratch.
    x = x_ref[...].astype(w1_ref.dtype)
    part = jnp.dot(x, w1_ref[...], preferred_element_type=jnp.float32)

    @pl.when(k == 0)
    def _():
        acc_ref[...] = part

    @pl.when(k != 0)
    def _():
        acc_ref[...] += part

    @pl.when(k == pl.num_programs(1) - 1)
    def _():
        # layer_1 bias (BN1 scale pre-folded) + ReLU; keep the VMEM-resident
        # intermediate in the matmul dtype (bf16 on the perf path).
        h1 = jnp.maximum(acc_ref[...] + b1_ref[...], 0.0).astype(w2_ref.dtype)

        # layer_2 (BN1 shift + BN2 scale pre-folded) + ReLU.
        h2 = jnp.dot(h1, w2_ref[...],
                     preferred_element_type=jnp.float32) + b2_ref[...]
        h2 = jnp.maximum(h2, 0.0).astype(w3_ref.dtype)

        # dropout(p=0.1) -> identity at inference.

        # layer_out (BN2 shift folded into the bias) as an NT dot:
        #   (1, H2p) . (TB, H2p)^T -> (1, TB)   [batch on lanes -> unmasked vst]
        logits = jax.lax.dot_general(
            w3_ref[...], h2,
            dimension_numbers=(((1,), (1,)), ((), ())),
            preferred_element_type=jnp.float32)
        o_ref[...] = logits + b3_ref[0, 0]              # scalar bias from SMEM


# -----------------------------------------------------------------------------
# Wrapper.
# -----------------------------------------------------------------------------
@functools.partial(jax.jit, static_argnames=("tile_b", "tile_k"))
def binary_image_classification_fwd(x, kparams, *, tile_b=1024, tile_k=2048):
    """x: (B, input_size) float (cast to the matmul dtype inside the kernel).
    kparams: output of fold_and_pack_params.  Returns (B, 1) f32 logits."""
    w1, b1, w2, b2, w3, b3 = kparams
    B, F = x.shape
    Hp = w1.shape[1]
    H2p = w2.shape[1]
    x_bytes = jnp.dtype(x.dtype).itemsize
    w_bytes = jnp.dtype(w1.dtype).itemsize

    # ---- K (input-feature) tiling: largest multiple-of-128 divisor of F that
    #      is <= tile_k; fall back to the whole row if none exists.
    tk = F
    if F > tile_k:
        for cand in range(tile_k, 127, -128):
            if F % cand == 0:
                tk = cand
                break
    num_k = F // tk

    # ---- batch tiling: single step (no pad) for small B; otherwise >= 2 steps
    #      of a multiple-of-128 tile so (a) both v7x TensorCores get work on the
    #      "parallel" axis and (b) the (1, tb) logit store stays lane-dense.
    vmem_limit = _vmem_limit_bytes()
    if B <= 256:
        tb = B
    else:
        tb = min(tile_b, _round_up((B + 1) // 2, 128))
        budget = int(0.75 * vmem_limit)
        while tb > 128 and _vmem_estimate(tb, tk, Hp, H2p,
                                          x_bytes, w_bytes, num_k) > budget:
            tb = max(128, ((tb // 2) // 128) * 128)
        # TODO(synk): if still over budget at tb=128 (huge F with no 128-multiple
        #             divisor), shrink tk as well.

    b_pad = _round_up(B, tb)
    if b_pad != B:
        # Only the ragged multi-tile case pays this extra pass over x.  Padded
        # rows produce garbage logits that are sliced away below (safe: nothing
        # reduces across the batch dimension inside the kernel).
        x = jnp.pad(x, ((0, b_pad - B), (0, 0)))

    grid = (b_pad // tb, num_k)
    total_steps = grid[0] * grid[1]

    def const(shape):   # grid-invariant parameter block -> single buffer
        return _spec(shape, lambda i, k: (0,) * len(shape), buffers=1)

    out = pl.pallas_call(
        _mlp_kernel,
        out_shape=jax.ShapeDtypeStruct((1, b_pad), jnp.float32),
        grid_spec=pltpu.PrefetchScalarGridSpec(
            num_scalar_prefetch=0,
            grid=grid,
            in_specs=[
                _spec((tb, tk), lambda i, k: (i, k),
                      buffers=3 if total_steps >= 3 else None),       # x stream
                _spec((tk, Hp), lambda i, k: (k, 0),
                      buffers=1 if num_k == 1 else None),             # layer_1 W
                const((1, Hp)),                                       # layer_1 b
                const((Hp, H2p)),                                     # layer_2 W
                const((1, H2p)),                                      # layer_2 b
                const((1, H2p)),                                      # layer_out W (row)
                pl.BlockSpec(memory_space=pltpu.MemorySpace.SMEM),    # layer_out b
            ],
            out_specs=pl.BlockSpec((1, tb), lambda i, k: (0, i)),     # lane-dense logits
            scratch_shapes=[pltpu.VMEM((tb, Hp), jnp.float32)],       # layer_1 f32 acc
        ),
        compiler_params=pltpu.CompilerParams(
            dimension_semantics=("parallel", "arbitrary"),
            vmem_limit_bytes=vmem_limit,
        ),
    )(x, w1, b1, w2, b2, w3, b3)

    return out[0, :B].reshape(B, 1)


# -----------------------------------------------------------------------------
# Parameter folding / init / reference.
# -----------------------------------------------------------------------------
def fold_and_pack_params(params, *, matmul_dtype=jnp.bfloat16, lane_pad=128):
    """Fold BN affines into the Linear layers, zero-pad hidden dims to lane
    multiples, transpose the output weight to a row, and cast MXU operands."""
    (w1, b1, s1, t1, w2, b2, s2, t2, w3, b3) = params
    # Folding BN through ReLU needs non-negative scales; gamma == 0 is safe
    # (channel becomes constant), negative gamma is not representable here.
    assert bool(jnp.all(s1 >= 0.0)) and bool(jnp.all(s2 >= 0.0)), \
        "BN-into-Linear fold requires non-negative BN scales"

    # BN fold:  BN(ReLU(z)) = ReLU(z*s) + t  (s >= 0); push t into the next bias.
    w1f = w1 * s1                        # (F, H)
    b1f = b1 * s1                        # (1, H)
    w2f = w2 * s2                        # (H, H2)
    b2f = (t1 @ w2 + b2) * s2            # (1, H2)
    b3f = t2 @ w3 + b3                   # (1, 1)

    def rup(n):
        return ((n + lane_pad - 1) // lane_pad) * lane_pad

    H, H2 = w1.shape[1], w2.shape[1]
    Hp, H2p = rup(H), rup(H2)
    w1f = jnp.pad(w1f, ((0, 0), (0, Hp - H)))
    b1f = jnp.pad(b1f, ((0, 0), (0, Hp - H)))
    w2f = jnp.pad(w2f, ((0, Hp - H), (0, H2p - H2)))
    b2f = jnp.pad(b2f, ((0, 0), (0, H2p - H2)))
    w3_row = jnp.pad(w3.T, ((0, 0), (0, H2p - H2)))   # (1, H2p)

    # MXU operands in matmul_dtype; biases / elementwise stay f32.
    return (w1f.astype(matmul_dtype), b1f.astype(jnp.float32),
            w2f.astype(matmul_dtype), b2f.astype(jnp.float32),
            w3_row.astype(matmul_dtype), b3f.astype(jnp.float32))


def init_params(key, input_size, hidden_size):
    """nn.Linear default init (U[-1/sqrt(in), 1/sqrt(in)]) + BN1d defaults."""
    h2 = hidden_size // 2
    ks = jax.random.split(key, 6)

    def linear(kw, kb, fan_in, fan_out):
        bound = 1.0 / jnp.sqrt(fan_in)
        w = jax.random.uniform(kw, (fan_in, fan_out), jnp.float32, -bound, bound)
        b = jax.random.uniform(kb, (1, fan_out), jnp.float32, -bound, bound)
        return w, b

    w1, b1 = linear(ks[0], ks[1], input_size, hidden_size)
    w2, b2 = linear(ks[2], ks[3], hidden_size, h2)
    w3, b3 = linear(ks[4], ks[5], h2, 1)

    eps = 1e-5

    def bn_fold(n):
        gamma = jnp.ones((1, n), jnp.float32)
        beta = jnp.zeros((1, n), jnp.float32)
        rmean = jnp.zeros((1, n), jnp.float32)
        rvar = jnp.ones((1, n), jnp.float32)
        scale = gamma / jnp.sqrt(rvar + eps)
        shift = beta - rmean * scale
        return scale, shift

    s1, t1 = bn_fold(hidden_size)
    s2, t2 = bn_fold(h2)
    return (w1, b1, s1, t1, w2, b2, s2, t2, w3, b3)


def reference_fwd(x, params):
    """Pure-JAX f32 reference of the PyTorch forward (inference mode)."""
    (w1, b1, s1, t1, w2, b2, s2, t2, w3, b3) = params
    h1 = jnp.maximum(x @ w1 + b1, 0.0) * s1 + t1
    h2 = jnp.maximum(h1 @ w2 + b2, 0.0) * s2 + t2
    return h2 @ w3 + b3


if __name__ == "__main__":
    key = jax.random.PRNGKey(0)
    k_x, k_p, k_x2, k_p2 = jax.random.split(key, 4)

    # --- small config (module-consistent shapes) ------------------------------
    batch, input_size, hidden_size = 8, 32, 32
    x = jax.random.normal(k_x, (batch, input_size), jnp.float32)
    params = init_params(k_p, input_size, hidden_size)
    ref = reference_fwd(x, params)

    # exact-semantics path: f32 matmul operands
    kp_f32 = fold_and_pack_params(params, matmul_dtype=jnp.float32)
    out_f32 = jax.block_until_ready(binary_image_classification_fwd(x, kp_f32))
    assert out_f32.shape == (batch, 1)
    assert jnp.allclose(out_f32, ref, atol=1e-4, rtol=1e-4), "f32 mismatch vs reference"

    # perf path (v5e/v6e/v7x): bf16 MXU operands, f32 accumulation
    kp_bf16 = fold_and_pack_params(params, matmul_dtype=jnp.bfloat16)
    out_bf16 = jax.block_until_ready(binary_image_classification_fwd(x, kp_bf16))
    assert out_bf16.shape == (batch, 1)
    assert jnp.allclose(out_bf16, ref, atol=5e-2, rtol=5e-2), "bf16 mismatch vs reference"

    # --- moderate config exercising multi-tile batch + K-reduction + padding --
    batch2, input2, hidden2 = 384, 256, 64
    x2 = jax.random.normal(k_x2, (batch2, input2), jnp.float32)
    params2 = init_params(k_p2, input2, hidden2)
    ref2 = reference_fwd(x2, params2)
    kp2 = fold_and_pack_params(params2, matmul_dtype=jnp.float32)
    out2 = jax.block_until_ready(
        binary_image_classification_fwd(x2, kp2, tile_b=256, tile_k=128))
    assert out2.shape == (batch2, 1)
    assert jnp.allclose(out2, ref2, atol=1e-4, rtol=1e-4), "tiled-path mismatch vs reference"

    print("KERNEL_OK")
</pallas_src>

<mosaic_0001>
module attributes {stable_mosaic.version = 11 : i64} {
  func.func @_mlp_kernel(%arg0: i32, %arg1: i32, %arg2: memref<8x32xf32, #tpu.memory_space<vmem>>, %arg3: memref<32x128xf32, #tpu.memory_space<vmem>>, %arg4: memref<1x128xf32, #tpu.memory_space<vmem>>, %arg5: memref<128x128xf32, #tpu.memory_space<vmem>>, %arg6: memref<1x128xf32, #tpu.memory_space<vmem>>, %arg7: memref<1x128xf32, #tpu.memory_space<vmem>>, %arg8: memref<1x1xf32, #tpu.memory_space<smem>>, %arg9: memref<1x8xf32, #tpu.memory_space<vmem>>, %arg10: memref<8x128xf32, #tpu.memory_space<vmem>>) attributes {dimension_semantics = [#tpu.dimension_semantics<parallel>, #tpu.dimension_semantics<arbitrary>], iteration_bounds = array<i64: 1, 1>, scalar_prefetch = 0 : i64, scratch_operands = 1 : i64, tpu.core_type = #tpu.core_type<tc>, window_params = [{transform_indices = @transform_0, window_bounds = array<i64: 8, 32>}, {transform_indices = @transform_1, window_bounds = array<i64: 32, 128>}, {pipeline_mode = #tpu.pipeline_mode<synchronous>, transform_indices = @transform_2, window_bounds = array<i64: 1, 128>}, {pipeline_mode = #tpu.pipeline_mode<synchronous>, transform_indices = @transform_3, window_bounds = array<i64: 128, 128>}, {pipeline_mode = #tpu.pipeline_mode<synchronous>, transform_indices = @transform_4, window_bounds = array<i64: 1, 128>}, {pipeline_mode = #tpu.pipeline_mode<synchronous>, transform_indices = @transform_5, window_bounds = array<i64: 1, 128>}, {transform_indices = @transform_6, window_bounds = array<i64: 1, 1>}, {transform_indices = @transform_7, window_bounds = array<i64: 1, 8>}]} {
    %c0 = arith.constant 0 : index
    %c0_0 = arith.constant 0 : index
    %0 = vector.load %arg2[%c0, %c0_0] : memref<8x32xf32, #tpu.memory_space<vmem>>, vector<8x32xf32>
    %c0_1 = arith.constant 0 : index
    %c0_2 = arith.constant 0 : index
    %1 = vector.load %arg3[%c0_1, %c0_2] : memref<32x128xf32, #tpu.memory_space<vmem>>, vector<32x128xf32>
    %cst = arith.constant dense<0.000000e+00> : vector<8x128xf32>
    %2 = tpu.matmul %0, %1, %cst {dimension_numbers = #tpu.dot_dimension_numbers<[1], [0], [0], [1], [0, 0, 1, 1], [], []>} : vector<8x32xf32>, vector<32x128xf32>, vector<8x128xf32> -> vector<8x128xf32>
    %c0_i32 = arith.constant 0 : i32
    %3 = arith.cmpi eq, %arg1, %c0_i32 : i32
    %4 = arith.extui %3 : i1 to i32
    %c0_i32_3 = arith.constant 0 : i32
    %5 = arith.cmpi ne, %4, %c0_i32_3 : i32
    scf.if %5 {
      %c0_8 = arith.constant 0 : index
      %c0_9 = arith.constant 0 : index
      %12 = vector.load %arg10[%c0_8, %c0_9] : memref<8x128xf32, #tpu.memory_space<vmem>>, vector<8x128xf32>
      tpu.vector_store %arg10[%c0_8, %c0_9], %2 {strides = array<i32>} : memref<8x128xf32, #tpu.memory_space<vmem>>, vector<8x128xf32>,
    } else {
    }
    %c0_i32_4 = arith.constant 0 : i32
    %6 = arith.cmpi ne, %arg1, %c0_i32_4 : i32
    %7 = arith.extui %6 : i1 to i32
    %c0_i32_5 = arith.constant 0 : i32
    %8 = arith.cmpi ne, %7, %c0_i32_5 : i32
    scf.if %8 {
      %c0_8 = arith.constant 0 : index
      %c0_9 = arith.constant 0 : index
      %12 = vector.load %arg10[%c0_8, %c0_9] : memref<8x128xf32, #tpu.memory_space<vmem>>, vector<8x128xf32>
      %13 = arith.addf %12, %2 : vector<8x128xf32>
      %c0_10 = arith.constant 0 : index
      %c0_11 = arith.constant 0 : index
      %14 = vector.load %arg10[%c0_10, %c0_11] : memref<8x128xf32, #tpu.memory_space<vmem>>, vector<8x128xf32>
      tpu.vector_store %arg10[%c0_10, %c0_11], %13 {strides = array<i32>} : memref<8x128xf32, #tpu.memory_space<vmem>>, vector<8x128xf32>,
    } else {
    }
    %c0_i32_6 = arith.constant 0 : i32
    %9 = arith.cmpi eq, %arg1, %c0_i32_6 : i32
    %10 = arith.extui %9 : i1 to i32
    %c0_i32_7 = arith.constant 0 : i32
    %11 = arith.cmpi ne, %10, %c0_i32_7 : i32
    scf.if %11 {
      %c0_8 = arith.constant 0 : index
      %c0_9 = arith.constant 0 : index
      %12 = vector.load %arg10[%c0_8, %c0_9] : memref<8x128xf32, #tpu.memory_space<vmem>>, vector<8x128xf32>
      %c0_10 = arith.constant 0 : index
      %c0_11 = arith.constant 0 : index
      %13 = vector.load %arg4[%c0_10, %c0_11] : memref<1x128xf32, #tpu.memory_space<vmem>>, vector<1x128xf32>
      %14 = vector.broadcast %13 : vector<1x128xf32> to vector<8x128xf32>
      %15 = arith.addf %12, %14 : vector<8x128xf32>
      %cst_12 = arith.constant 0.000000e+00 : f32
      %16 = vector.broadcast %cst_12 : f32 to vector<8x128xf32>
      %17 = arith.maximumf %15, %16 : vector<8x128xf32>
      %c0_13 = arith.constant 0 : index
      %c0_14 = arith.constant 0 : index
      %18 = vector.load %arg5[%c0_13, %c0_14] : memref<128x128xf32, #tpu.memory_space<vmem>>, vector<128x128xf32>
      %cst_15 = arith.constant dense<0.000000e+00> : vector<8x128xf32>
      %19 = tpu.matmul %17, %18, %cst_15 {dimension_numbers = #tpu.dot_dimension_numbers<[1], [0], [0], [1], [0, 0, 1, 1], [], []>} : vector<8x128xf32>, vector<128x128xf32>, vector<8x128xf32> -> vector<8x128xf32>
      %c0_16 = arith.constant 0 : index
      %c0_17 = arith.constant 0 : index
      %20 = vector.load %arg6[%c0_16, %c0_17] : memref<1x128xf32, #tpu.memory_space<vmem>>, vector<1x128xf32>
      %21 = vector.broadcast %20 : vector<1x128xf32> to vector<8x128xf32>
      %22 = arith.addf %19, %21 : vector<8x128xf32>
      %cst_18 = arith.constant 0.000000e+00 : f32
      %23 = vector.broadcast %cst_18 : f32 to vector<8x128xf32>
      %24 = arith.maximumf %22, %23 : vector<8x128xf32>
      %c0_19 = arith.constant 0 : index
      %c0_20 = arith.constant 0 : index
      %25 = vector.load %arg7[%c0_19, %c0_20] : memref<1x128xf32, #tpu.memory_space<vmem>>, vector<1x128xf32>
      %cst_21 = arith.constant dense<0.000000e+00> : vector<1x8xf32>
      %26 = tpu.matmul %25, %24, %cst_21 {dimension_numbers = #tpu.dot_dimension_numbers<[1], [1], [0], [0], [0, 0, 1, 0], [], []>} : vector<1x128xf32>, vector<8x128xf32>, vector<1x8xf32> -> vector<1x8xf32>
      %c0_22 = arith.constant 0 : index
      %c0_23 = arith.constant 0 : index
      %27 = memref.load %arg8[%c0_22, %c0_23] : memref<1x1xf32, #tpu.memory_space<smem>>
      %28 = vector.broadcast %27 : f32 to vector<1x8xf32>
      %29 = arith.addf %26, %28 : vector<1x8xf32>
      %c0_24 = arith.constant 0 : index
      %c0_25 = arith.constant 0 : index
      %30 = vector.load %arg9[%c0_24, %c0_25] : memref<1x8xf32, #tpu.memory_space<vmem>>, vector<1x8xf32>
      tpu.vector_store %arg9[%c0_24, %c0_25], %29 {strides = array<i32>} : memref<1x8xf32, #tpu.memory_space<vmem>>, vector<1x8xf32>,
    } else {
    }
    return
  }
  func.func @transform_0(%arg0: i32, %arg1: i32) -> (i32, i32) {
    %c0_i32 = arith.constant 0 : i32
    return %arg0, %arg1 : i32, i32
  }
  func.func @transform_1(%arg0: i32, %arg1: i32) -> (i32, i32) {
    %c0_i32 = arith.constant 0 : i32
    %c0_i32_0 = arith.constant 0 : i32
    return %arg1, %c0_i32 : i32, i32
  }
  func.func @transform_2(%arg0: i32, %arg1: i32) -> (i32, i32) {
    %c0_i32 = arith.constant 0 : i32
    %c0_i32_0 = arith.constant 0 : i32
    %c0_i32_1 = arith.constant 0 : i32
    return %c0_i32, %c0_i32_0 : i32, i32
  }
  func.func @transform_3(%arg0: i32, %arg1: i32) -> (i32, i32) {
    %c0_i32 = arith.constant 0 : i32
    %c0_i32_0 = arith.constant 0 : i32
    %c0_i32_1 = arith.constant 0 : i32
    return %c0_i32, %c0_i32_0 : i32, i32
  }
  func.func @transform_4(%arg0: i32, %arg1: i32) -> (i32, i32) {
    %c0_i32 = arith.constant 0 : i32
    %c0_i32_0 = arith.constant 0 : i32
    %c0_i32_1 = arith.constant 0 : i32
    return %c0_i32, %c0_i32_0 : i32, i32
  }
  func.func @transform_5(%arg0: i32, %arg1: i32) -> (i32, i32) {
    %c0_i32 = arith.constant 0 : i32
    %c0_i32_0 = arith.constant 0 : i32
    %c0_i32_1 = arith.constant 0 : i32
    return %c0_i32, %c0_i32_0 : i32, i32
  }
  func.func @transform_6(%arg0: i32, %arg1: i32) -> (i32, i32) {
    %c0_i32 = arith.constant 0 : i32
    %c0_i32_0 = arith.constant 0 : i32
    %c0_i32_1 = arith.constant 0 : i32
    return %c0_i32, %c0_i32_0 : i32, i32
  }
  func.func @transform_7(%arg0: i32, %arg1: i32) -> (i32, i32) {
    %c0_i32 = arith.constant 0 : i32
    %c0_i32_0 = arith.constant 0 : i32
    return %c0_i32, %arg0 : i32, i32
  }
}

</mosaic_0001>

<llo_original>
// kernel: binary_image_classification_fwd.1
$region0: #{binary_image_classification_fwd.1}
  #allocation0 [shape = 'u32[]', space=smem, size = 0x4, offset = 0x4, fixed_abs, tag = 'smem constant byte address 0x4 - core index']
  #allocation1 [shape = 'u32[144,128]{1,0:T(1,128)}', space=vmem, size = 0x12000, scoped, tag = 'internal scratch']
  #allocation2 [shape = 'f32[8,128]{1,0:T(8,128)}', space=vmem, size = 0x1000, scoped, tag = 'scratch operand']
  #allocation3 [shape = 'f32[1,1]{1,0:T(1,128)S(6)}', space=smem, size = 0x200, scoped, tag = 'scoped memory for binary_image_classification_fwd.1']
  %s0 = inlined_call_operand.hbm [shape: f32[8,32], index: 0, kind: input, shape index: {}]
  %s1 = inlined_call_operand.hbm [shape: f32[32,128], index: 1, kind: input, shape index: {}]
  %s2 = inlined_call_operand.vmem [shape: f32[1,128], index: 2, kind: input, shape index: {}]
  %s3 = inlined_call_operand.hbm [shape: f32[128,128], index: 3, kind: input, shape index: {}]
  %s4 = inlined_call_operand.vmem [shape: f32[1,128], index: 4, kind: input, shape index: {}]
  %s5 = inlined_call_operand.vmem [shape: f32[1,128], index: 5, kind: input, shape index: {}]
  %s6 = inlined_call_operand.<no memory space> [shape: f32[1,1], index: 6, kind: input, shape index: {}]
  %s7 = inlined_call_operand.hbm [shape: f32[1,8], index: 7, kind: output, shape index: {}]
  %s8 = sld [smem:[#allocation0]]
  $region62: #{binary_image_classification_fwd.1} parent=0
    _
  %s10 = ssub.s32 1, %s8
  %s11 = scalar_select 0, %s10, %s8
  %12 = sst [smem:[#allocation3]] %s6
  $region1: #{binary_image_classification_fwd.1} parent=0
    #allocation4 [shape = 'u8[4096]{0}', space=vmem, size = 0x1000, scoped, tag = 'input window, operand 0, single buffered']
    #allocation5 [shape = 's32[1]{0}', space=sflag, size = 0x4, scoped, tag = 'scoped memory for binary_image_classification_fwd.1']
    #allocation6 [shape = 's32[1]{0}', space=sflag, size = 0x4, scoped, tag = 'scoped memory for binary_image_classification_fwd.1']
    #allocation7 [shape = 'u8[16384]{0}', space=vmem, size = 0x4000, scoped, tag = 'input window, operand 1, single buffered']
    #allocation8 [shape = 's32[1]{0}', space=sflag, size = 0x4, scoped, tag = 'scoped memory for binary_image_classification_fwd.1']
    #allocation9 [shape = 'u8[65536]{0}', space=vmem, size = 0x10000, scoped, tag = 'input window, operand 3, single buffered']
    #allocation10 [shape = 'u8[512]{0}', space=vmem, size = 0x400, scoped, tag = 'output window, operand 0, single buffered']
    %13 = vsyncpa [#allocation5], 0
    %14 = vsyncpa [#allocation8], 0
    %15 = vsyncpa [#allocation6], 0
    // Predicated region
    $region2: #{binary_image_classification_fwd.1} parent=1 // pred_check
      _
    $region3: #{binary_image_classification_fwd.1} parent=1 // pred_check_branch
      %17 = sbr.rel (0) target = $region5
    $region4: #{binary_image_classification_fwd.1} parent=1 // pred_region
      %s19 = ssub.s32 128, 128
      %20 = vsyncadd [#allocation5], %s19
      %s22 = sshll.u32 [#allocation4], 4
      %s23 = int_to_ptr.vmem [resolvable:$true] %s22
      %25 = dma.hbm_to_vmem [thread:$0]  %s0, 128, %s23, [#allocation5]
    $region5: #{binary_image_classification_fwd.1} parent=1 // pred_fallthru
      _
    // Predicated region
    $region6: #{binary_image_classification_fwd.1} parent=1 // pred_check
      _
    $region7: #{binary_image_classification_fwd.1} parent=1 // pred_check_branch
      %27 = sbr.rel (0) target = $region9
    $region8: #{binary_image_classification_fwd.1} parent=1 // pred_region
      %s29 = ssub.s32 512, 512
      %30 = vsyncadd [#allocation8], %s29
      %s31 = sshll.u32 [#allocation7], 4
      %s32 = int_to_ptr.vmem [resolvable:$true] %s31
      %37 = dma.hbm_to_vmem [thread:$0]  %s1, 512, %s32, [#allocation8], 128, 128, 8
    $region9: #{binary_image_classification_fwd.1} parent=1 // pred_fallthru
      _
    // Predicated region
    $region10: #{binary_image_classification_fwd.1} parent=1 // pred_check
      _
    $region11: #{binary_image_classification_fwd.1} parent=1 // pred_check_branch
      %39 = sbr.rel (0) target = $region13
    $region12: #{binary_image_classification_fwd.1} parent=1 // pred_region
      _
    $region13: #{binary_image_classification_fwd.1} parent=1 // pred_fallthru
      _
    // Predicated region
    $region14: #{binary_image_classification_fwd.1} parent=1 // pred_check
      _
    $region15: #{binary_image_classification_fwd.1} parent=1 // pred_check_branch
      %41 = sbr.rel (0) target = $region17
    $region16: #{binary_image_classification_fwd.1} parent=1 // pred_region
      %s43 = ssub.s32 2048, 2048
      %44 = vsyncadd [#allocation8], %s43
      %s45 = sshll.u32 [#allocation9], 4
      %s46 = int_to_ptr.vmem [resolvable:$true] %s45
      %51 = dma.hbm_to_vmem [thread:$0]  %s3, 2048, %s46, [#allocation8], 128, 128, 8
    $region17: #{binary_image_classification_fwd.1} parent=1 // pred_fallthru
      _
    // Predicated region
    $region18: #{binary_image_classification_fwd.1} parent=1 // pred_check
      _
    $region19: #{binary_image_classification_fwd.1} parent=1 // pred_check_branch
      %53 = sbr.rel (0) target = $region21
    $region20: #{binary_image_classification_fwd.1} parent=1 // pred_region
      _
    $region21: #{binary_image_classification_fwd.1} parent=1 // pred_fallthru
      _
    // Predicated region
    $region22: #{binary_image_classification_fwd.1} parent=1 // pred_check
      _
    $region23: #{binary_image_classification_fwd.1} parent=1 // pred_check_branch
      %55 = sbr.rel (0) target = $region25
    $region24: #{binary_image_classification_fwd.1} parent=1 // pred_region
      _
    $region25: #{binary_image_classification_fwd.1} parent=1 // pred_fallthru
      _
    // Predicated region
    $region26: #{binary_image_classification_fwd.1} parent=1 // pred_check
      _
    $region27: #{binary_image_classification_fwd.1} parent=1 // pred_check_branch
      %57 = sbr.rel (0) target = $region29
    $region28: #{binary_image_classification_fwd.1} parent=1 // pred_region
      _
    $region29: #{binary_image_classification_fwd.1} parent=1 // pred_fallthru
      _
    // Predicated region
    $region30: #{binary_image_classification_fwd.1} parent=1 // pred_check
      _
    $region31: #{binary_image_classification_fwd.1} parent=1 // pred_check_branch
      %59 = sbr.rel (0) target = $region33
    $region32: #{binary_image_classification_fwd.1} parent=1 // pred_region
      %60 = dma.done [#allocation5], 128
    $region33: #{binary_image_classification_fwd.1} parent=1 // pred_fallthru
      _
    // Predicated region
    $region34: #{binary_image_classification_fwd.1} parent=1 // pred_check
      _
    $region35: #{binary_image_classification_fwd.1} parent=1 // pred_check_branch
      %62 = sbr.rel (0) target = $region37
    $region36: #{binary_image_classification_fwd.1} parent=1 // pred_region
      %63 = dma.done [#allocation8], 512
    $region37: #{binary_image_classification_fwd.1} parent=1 // pred_fallthru
      _
    // Predicated region
    $region38: #{binary_image_classification_fwd.1} parent=1 // pred_check
      _
    $region39: #{binary_image_classification_fwd.1} parent=1 // pred_check_branch
      %65 = sbr.rel (0) target = $region41
    $region40: #{binary_image_classification_fwd.1} parent=1 // pred_region
      %66 = dma.done [#allocation8], 2048
    $region41: #{binary_image_classification_fwd.1} parent=1 // pred_fallthru
      _
    %v67 = vld [vmem:[#allocation4] sm:$0xff]
    %v68 = vld [vmem:[#allocation7] sm:$0xff]
    %v69 = vld [vmem:[#allocation7 + $0x8] sm:$0xff]
    %v70 = vld [vmem:[#allocation7 + $0x10] sm:$0xff]
    %v71 = vld [vmem:[#allocation7 + $0x18] sm:$0xff]
    %vm72 = vcmask 261120
    %v74 = vsel %vm72, %v67, 0
    %76 = vmatprep.subr.mxu0 0.0
    %77 = vmatpush1.msra.mxu0 %v68
    %78 = vmatprep.subr.mxu0 0.0
    %79 = vmatpush1.msra.mxu0 %v69
    %80 = vmatprep.subr.mxu0 0.0
    %81 = vmatpush1.msra.mxu0 %v70
    %82 = vmatprep.subr.mxu0 0.0
    %83 = vmatpush1.msra.mxu0 %v71
    %84 = vmatprep.subr.mxu0 0.0
    %85 = vmatpush1.msra.mxu0 0.0
    %86 = vmatprep.subr.mxu0 0.0
    %87 = vmatpush1.msra.mxu0 0.0
    %88 = vmatprep.subr.mxu0 0.0
    %89 = vmatpush1.msra.mxu0 0.0
    %90 = vmatprep.subr.mxu0 0.0
    %91 = vmatpush1.msra.mxu0 0.0
    %92 = vmatprep.subr.mxu0 0.0
    %93 = vmatpush1.msra.mxu0 0.0
    %94 = vmatprep.subr.mxu0 0.0
    %95 = vmatpush1.msra.mxu0 0.0
    %96 = vmatprep.subr.mxu0 0.0
    %97 = vmatpush1.msra.mxu0 0.0
    %98 = vmatprep.subr.mxu0 0.0
    %99 = vmatpush1.msra.mxu0 0.0
    %100 = vmatprep.subr.mxu0 0.0
    %101 = vmatpush1.msra.mxu0 0.0
    %102 = vmatprep.subr.mxu0 0.0
    %103 = vmatpush1.msra.mxu0 0.0
    %104 = vmatprep.subr.mxu0 0.0
    %105 = vmatpush1.msra.mxu0 0.0
    %106 = vmatprep.subr.mxu0 0.0
    %107 = vmatpush1.msra.mxu0 0.0
    %108 = vmatprep.subr.mxu0 0.0
    %109 = vmatpush1.msra.mxu0 0.0
    %110 = vmatprep.subr.mxu0 0.0
    %111 = vmatpush1.msra.mxu0 0.0
    %112 = vmatprep.subr.mxu0 0.0
    %113 = vmatpush1.msra.mxu0 0.0
    %114 = vmatprep.subr.mxu0 0.0
    %115 = vmatpush1.msra.mxu0 0.0
    %116 = vmatprep.subr.mxu0 0.0
    %117 = vmatpush1.msra.mxu0 0.0
    %118 = vmatprep.subr.mxu0 0.0
    %119 = vmatpush1.msra.mxu0 0.0
    %120 = vmatprep.subr.mxu0 0.0
    %121 = vmatpush1.msra.mxu0 0.0
    %122 = vmatprep.subr.mxu0 0.0
    %123 = vmatpush1.msra.mxu0 0.0
    %124 = vmatprep.subr.mxu0 0.0
    %125 = vmatpush1.msra.mxu0 0.0
    %126 = vmatprep.subr.mxu0 0.0
    %127 = vmatpush1.msra.mxu0 0.0
    %128 = vmatprep.subr.mxu0 0.0
    %129 = vmatpush1.msra.mxu0 0.0
    %130 = vmatprep.subr.mxu0 0.0
    %131 = vmatpush1.msra.mxu0 0.0
    %132 = vmatprep.subr.mxu0 0.0
    %133 = vmatpush1.msra.mxu0 0.0
    %134 = vmatprep.subr.mxu0 0.0
    %135 = vmatpush1.msra.mxu0 0.0
    %136 = vmatprep.subr.mxu0 0.0
    %137 = vmatpush1.msra.mxu0 0.0
    %138 = vmatprep.subr.mxu0 0.0
    %139 = vmatpush1.msra.mxu0 0.0
    %140 = vmatprep.mubr.f32.mxu0 0.0
    %141 = vmatmul.mubr.f32.gmra.mrb[0].mxu0 %v74
    %v142 = vpop.f32.mrb[0].mxu0
    %v143 = vadd.f32 0.0, %v142
    %v144 = vpop.f32.mrb[0].mxu0
    %145 = vdwg.mxu0
    %p146 = scmp.eq.s32.totalorder 0, 0
    // Predicated region
    $region42: #{binary_image_classification_fwd.1} parent=1 // pred_check
      %p147 = pneg %p146
    $region43: #{binary_image_classification_fwd.1} parent=1 // pred_check_branch
      %149 = sbr.rel (%p147) target = $region45
    $region44: #{binary_image_classification_fwd.1} parent=1 // pred_region
      %150 = vst [vmem:[#allocation2] sm:$0xff] %v143
    $region45: #{binary_image_classification_fwd.1} parent=1 // pred_fallthru
      _
    %p151 = scmp.ne.s32.totalorder 0, 0
    // Predicated region
    $region46: #{binary_image_classification_fwd.1} parent=1 // pred_check
      %p152 = pneg %p151
    $region47: #{binary_image_classification_fwd.1} parent=1 // pred_check_branch
      %154 = sbr.rel (%p152) target = $region49
    $region48: #{binary_image_classification_fwd.1} parent=1 // pred_region
      %v155 = vld [vmem:[#allocation2] sm:$0xff]
      %v156 = vadd.f32 %v155, %v143
      %157 = vst [vmem:[#allocation2] sm:$0xff] %v156
    $region49: #{binary_image_classification_fwd.1} parent=1 // pred_fallthru
      _
    // Predicated region
    $region50: #{binary_image_classification_fwd.1} parent=1 // pred_check
      %p158 = pneg %p146
    $region51: #{binary_image_classification_fwd.1} parent=1 // pred_check_branch
      %160 = sbr.rel (%p158) target = $region53
    $region52: #{binary_image_classification_fwd.1} parent=1 // pred_region
      %v161 = vld [vmem:[#allocation2] sm:$0xff]
      %v162 = vld [vmem:[%s2] sm:$0x1]
      %v164 = vlaneseq
      %v165 = vshrl.u32 %v164, 7
      %v166 = vsub.s32 0, %v165
      %v167 = vrot.slane %v162, %v166
      %v169 = vadd.f32 %v161, %v167
      %v170 = vmax.f32 %v169, 0.0
      %v171 = vld [vmem:[#allocation9] sm:$0xff]
      %v172 = vld [vmem:[#allocation9 + $0x8] sm:$0xff]
      %v173 = vld [vmem:[#allocation9 + $0x10] sm:$0xff]
      %v174 = vld [vmem:[#allocation9 + $0x18] sm:$0xff]
      %v175 = vld [vmem:[#allocation9 + $0x20] sm:$0xff]
      %v176 = vld [vmem:[#allocation9 + $0x28] sm:$0xff]
      %v177 = vld [vmem:[#allocation9 + $0x30] sm:$0xff]
      %v178 = vld [vmem:[#allocation9 + $0x38] sm:$0xff]
      %v179 = vld [vmem:[#allocation9 + $0x40] sm:$0xff]
      %v180 = vld [vmem:[#allocation9 + $0x48] sm:$0xff]
      %v181 = vld [vmem:[#allocation9 + $0x50] sm:$0xff]
      %v182 = vld [vmem:[#allocation9 + $0x58] sm:$0xff]
      %v183 = vld [vmem:[#allocation9 + $0x60] sm:$0xff]
      %v184 = vld [vmem:[#allocation9 + $0x68] sm:$0xff]
      %v185 = vld [vmem:[#allocation9 + $0x70] sm:$0xff]
      %v186 = vld [vmem:[#allocation9 + $0x78] sm:$0xff]
      %v187 = vld [vmem:[%s4] sm:$0x1]
      %v189 = vlaneseq
      %v190 = vshrl.u32 %v189, 7
      %v191 = vsub.s32 0, %v190
      %v192 = vrot.slane %v187, %v191
      %194 = vmatprep.subr.mxu0 0.0
      %195 = vmatpush1.msra.mxu0 %v171
      %196 = vmatprep.subr.mxu0 0.0
      %197 = vmatpush1.msra.mxu0 %v172
      %198 = vmatprep.subr.mxu0 0.0
      %199 = vmatpush1.msra.mxu0 %v173
      %200 = vmatprep.subr.mxu0 0.0
      %201 = vmatpush1.msra.mxu0 %v174
      %202 = vmatprep.subr.mxu0 0.0
      %203 = vmatpush1.msra.mxu0 %v175
      %204 = vmatprep.subr.mxu0 0.0
      %205 = vmatpush1.msra.mxu0 %v176
      %206 = vmatprep.subr.mxu0 0.0
      %207 = vmatpush1.msra.mxu0 %v177
      %208 = vmatprep.subr.mxu0 0.0
      %209 = vmatpush1.msra.mxu0 %v178
      %210 = vmatprep.subr.mxu0 0.0
      %211 = vmatpush1.msra.mxu0 %v179
      %212 = vmatprep.subr.mxu0 0.0
      %213 = vmatpush1.msra.mxu0 %v180
      %214 = vmatprep.subr.mxu0 0.0
      %215 = vmatpush1.msra.mxu0 %v181
      %216 = vmatprep.subr.mxu0 0.0
      %217 = vmatpush1.msra.mxu0 %v182
      %218 = vmatprep.subr.mxu0 0.0
      %219 = vmatpush1.msra.mxu0 %v183
      %220 = vmatprep.subr.mxu0 0.0
      %221 = vmatpush1.msra.mxu0 %v184
      %222 = vmatprep.subr.mxu0 0.0
      %223 = vmatpush1.msra.mxu0 %v185
      %224 = vmatprep.subr.mxu0 0.0
      %225 = vmatpush1.msra.mxu0 %v186
      %226 = vmatprep.subr.mxu0 0.0
      %227 = vmatpush1.msra.mxu0 0.0
      %228 = vmatprep.subr.mxu0 0.0
      %229 = vmatpush1.msra.mxu0 0.0
      %230 = vmatprep.subr.mxu0 0.0
      %231 = vmatpush1.msra.mxu0 0.0
      %232 = vmatprep.subr.mxu0 0.0
      %233 = vmatpush1.msra.mxu0 0.0
      %234 = vmatprep.subr.mxu0 0.0
      %235 = vmatpush1.msra.mxu0 0.0
      %236 = vmatprep.subr.mxu0 0.0
      %237 = vmatpush1.msra.mxu0 0.0
      %238 = vmatprep.subr.mxu0 0.0
      %239 = vmatpush1.msra.mxu0 0.0
      %240 = vmatprep.subr.mxu0 0.0
      %241 = vmatpush1.msra.mxu0 0.0
      %242 = vmatprep.subr.mxu0 0.0
      %243 = vmatpush1.msra.mxu0 0.0
      %244 = vmatprep.subr.mxu0 0.0
      %245 = vmatpush1.msra.mxu0 0.0
      %246 = vmatprep.subr.mxu0 0.0
      %247 = vmatpush1.msra.mxu0 0.0
      %248 = vmatprep.subr.mxu0 0.0
      %249 = vmatpush1.msra.mxu0 0.0
      %250 = vmatprep.subr.mxu0 0.0
      %251 = vmatpush1.msra.mxu0 0.0
      %252 = vmatprep.subr.mxu0 0.0
      %253 = vmatpush1.msra.mxu0 0.0
      %254 = vmatprep.subr.mxu0 0.0
      %255 = vmatpush1.msra.mxu0 0.0
      %256 = vmatprep.subr.mxu0 0.0
      %257 = vmatpush1.msra.mxu0 0.0
      %258 = vmatprep.mubr.f32.mxu0 0.0
      %259 = vmatmul.mubr.f32.gmra.mrb[0].mxu0 %v170
      %v260 = vpop.f32.mrb[0].mxu0
      %v261 = vadd.f32 %v192, %v260
      %v262 = vpop.f32.mrb[0].mxu0
      %263 = vdwg.mxu0
      %v264 = vmax.f32 %v261, 0.0
      %v265 = vld [vmem:[%s5] sm:$0x1]
      %s266 = sld [smem:[#allocation3]]
      %v267 = vstv %s266
      %268 = vmatprep.subr.mxu0 0.0
      %269 = vmatpush1.xpose.msra.mxu0 %v264
      %270 = vmatprep.subr.mxu0 0.0
      %271 = vmatpush1.xpose.msra.mxu0 0.0
      %272 = vmatprep.subr.mxu0 0.0
      %273 = vmatpush1.xpose.msra.mxu0 0.0
      %274 = vmatprep.subr.mxu0 0.0
      %275 = vmatpush1.xpose.msra.mxu0 0.0
      %276 = vmatprep.subr.mxu0 0.0
      %277 = vmatpush1.xpose.msra.mxu0 0.0
      %278 = vmatprep.subr.mxu0 0.0
      %279 = vmatpush1.xpose.msra.mxu0 0.0
      %280 = vmatprep.subr.mxu0 0.0
      %281 = vmatpush1.xpose.msra.mxu0 0.0
      %282 = vmatprep.subr.mxu0 0.0
      %283 = vmatpush1.xpose.msra.mxu0 0.0
      %284 = vmatprep.subr.mxu0 0.0
      %285 = vmatpush1.xpose.msra.mxu0 0.0
      %286 = vmatprep.subr.mxu0 0.0
      %287 = vmatpush1.xpose.msra.mxu0 0.0
      %288 = vmatprep.subr.mxu0 0.0
      %289 = vmatpush1.xpose.msra.mxu0 0.0
      %290 = vmatprep.subr.mxu0 0.0
      %291 = vmatpush1.xpose.msra.mxu0 0.0
      %292 = vmatprep.subr.mxu0 0.0
      %293 = vmatpush1.xpose.msra.mxu0 0.0
      %294 = vmatprep.subr.mxu0 0.0
      %295 = vmatpush1.xpose.msra.mxu0 0.0
      %296 = vmatprep.subr.mxu0 0.0
      %297 = vmatpush1.xpose.msra.mxu0 0.0
      %298 = vmatprep.subr.mxu0 0.0
      %299 = vmatpush1.xpose.msra.mxu0 0.0
      %300 = vmatprep.subr.mxu0 0.0
      %301 = vmatpush1.xpose.msra.mxu0 0.0
      %302 = vmatprep.subr.mxu0 0.0
      %303 = vmatpush1.xpose.msra.mxu0 0.0
      %304 = vmatprep.subr.mxu0 0.0
      %305 = vmatpush1.xpose.msra.mxu0 0.0
      %306 = vmatprep.subr.mxu0 0.0
      %307 = vmatpush1.xpose.msra.mxu0 0.0
      %308 = vmatprep.subr.mxu0 0.0
      %309 = vmatpush1.xpose.msra.mxu0 0.0
      %310 = vmatprep.subr.mxu0 0.0
      %311 = vmatpush1.xpose.msra.mxu0 0.0
      %312 = vmatprep.subr.mxu0 0.0
      %313 = vmatpush1.xpose.msra.mxu0 0.0
      %314 = vmatprep.subr.mxu0 0.0
      %315 = vmatpush1.xpose.msra.mxu0 0.0
      %316 = vmatprep.subr.mxu0 0.0
      %317 = vmatpush1.xpose.msra.mxu0 0.0
      %318 = vmatprep.subr.mxu0 0.0
      %319 = vmatpush1.xpose.msra.mxu0 0.0
      %320 = vmatprep.subr.mxu0 0.0
      %321 = vmatpush1.xpose.msra.mxu0 0.0
      %322 = vmatprep.subr.mxu0 0.0
      %323 = vmatpush1.xpose.msra.mxu0 0.0
      %324 = vmatprep.subr.mxu0 0.0
      %325 = vmatpush1.xpose.msra.mxu0 0.0
      %326 = vmatprep.subr.mxu0 0.0
      %327 = vmatpush1.xpose.msra.mxu0 0.0
      %328 = vmatprep.subr.mxu0 0.0
      %329 = vmatpush1.xpose.msra.mxu0 0.0
      %330 = vmatprep.subr.mxu0 0.0
      %331 = vmatpush1.xpose.msra.mxu0 0.0
      %332 = vmatprep.mubr.f32.mxu0 0.0
      %333 = vmatmul.mubr.f32.gmra.mrb[0].mxu0 %v265
      %v334 = vpop.f32.mrb[0].mxu0
      %v335 = vadd.f32 %v267, %v334
      %v336 = vpop.f32.mrb[0].mxu0
      %337 = vdwg.mxu0
      %vm338 = vcmask 57344
      %339 = vst.msk [vmem:[#allocation10] sm:$0x1] %vm338, %v335
    $region53: #{binary_image_classification_fwd.1} parent=1 // pred_fallthru
      _
    // Predicated region
    $region54: #{binary_image_classification_fwd.1} parent=1 // pred_check
      _
    $region55: #{binary_image_classification_fwd.1} parent=1 // pred_check_branch
      %341 = sbr.rel (0) target = $region57
    $region56: #{binary_image_classification_fwd.1} parent=1 // pred_region
      %s343 = ssub.s32 16, 16
      %344 = vsyncadd [#allocation6], %s343
      %s346 = sshll.u32 [#allocation10], 4
      %s347 = int_to_ptr.vmem [resolvable:$true] %s346
      %349 = dma.vmem_to_hbm [thread:$0]  %s347, 16, %s7, [#allocation6]
    $region57: #{binary_image_classification_fwd.1} parent=1 // pred_fallthru
      _
    // Predicated region
    $region58: #{binary_image_classification_fwd.1} parent=1 // pred_check
      _
    $region59: #{binary_image_classification_fwd.1} parent=1 // pred_check_branch
      %351 = sbr.rel (0) target = $region61
    $region60: #{binary_image_classification_fwd.1} parent=1 // pred_region
      %352 = dma.done [#allocation6], 16
    $region61: #{binary_image_classification_fwd.1} parent=1 // pred_fallthru
      _
    %353 = vsyncpa [#allocation5], 1
    %354 = vsyncpa [#allocation8], 1
    %355 = vsyncpa [#allocation6], 1

</llo_original>
